<compile_context>
chip_gen: v5e
topology: v5e:2x2
jax: 0.10.0
libtpu: 0.0.40
codegen_flags: <defaults>
</compile_context>

<pallas_src>
import functools

import jax
import jax.numpy as jnp
from jax.experimental import pallas as pl
from jax.experimental.pallas import tpu as pltpu


def _round_up(x: int, m: int) -> int:
    return ((x + m - 1) // m) * m


def _physical_vmem_bytes() -> int:
    """Per-TensorCore VMEM capacity; conservative fallback if query fails."""
    try:
        return int(pltpu.get_tpu_info().vmem_capacity_bytes)
    except Exception:
        return 64 * 1024 * 1024  # v7x per-TC VMEM (smallest of the three gens)


def _default_row_tile(M, T, act_itemsize, w_itemsize, budget, tm_cap):
    """Row tile (multiple of 8) sized for VMEM and megacore-friendly grids."""
    if M <= 8:
        return M  # block equals full first dim -> always legal
    # Resident weights + bias are single-buffered (pl.Buffered(1)).
    weight_bytes = 2 * T * T * w_itemsize + T * 4
    # Double-buffered: 2 input tiles + 1 output tile per grid step.
    per_row = (2 * 2 + 2) * T * act_itemsize
    avail = max(budget - weight_bytes, per_row * 8)
    tm = max(avail // per_row, 8)
    tm = min(int(tm), tm_cap, _round_up(M, 8))
    # Target >= 4 grid steps: on v7x each TensorCore then gets >= 2 pipelined
    # steps (step-0 weight-DMA prologue is hidden); per-step overhead (~0.35us)
    # stays negligible at these tile sizes on v5e/v6e too.
    tm = min(tm, max(8, _round_up(pl.cdiv(M, 4), 8)))
    tm = int(_round_up(tm, 8))
    # Best-effort: make the grid count even so the two v7x TensorCores get
    # equal work (an odd grid leaves one core ~50% longer on the tail).
    if pl.cdiv(M, tm) > 1 and pl.cdiv(M, tm) % 2 == 1:
        for cand in range(tm, 7, -8):
            if pl.cdiv(M, cand) % 2 == 0:
                tm = cand
                break
    return tm


def _token_concat_kernel(low_ref, high_ref, w1_ref, w2_ref, b_ref, out_ref):
    """One row tile of: out = low @ w1 + high @ w2 + b.

    low_ref, high_ref : (tm, T)  input token tiles (activation dtype -> MXU)
    w1_ref, w2_ref    : (T, T)   transposed weight halves, resident in VMEM
    b_ref             : (1, T)   bias (f32), resident in VMEM
    out_ref           : (tm, T)  output tile
    """
    # Single f32 accumulation chain: on v7x the second dot accumulates in the
    # MRB; on v5e/v6e the VPU add is free filler under the MXU.
    acc = jnp.dot(low_ref[...], w1_ref[...], preferred_element_type=jnp.float32)
    acc = acc + jnp.dot(high_ref[...], w2_ref[...],
                        preferred_element_type=jnp.float32)
    acc = acc + b_ref[...]
    out_ref[...] = acc.astype(out_ref.dtype)


@functools.partial(jax.jit, static_argnames=("tm",))
def multivit_token_concatenator(low_res, high_res, weight, bias, *, tm=None):
    """Pallas implementation of MultiViTTokenConcatenator.forward.

    Args:
      low_res:  [B, N, T]
      high_res: [B, N, T]  (must match low_res shape & dtype)
      weight:   [T, 2*T]   (nn.Linear weight, out_features x in_features)
      bias:     [T]
      tm:       optional row-tile override (rows of B*N per grid step)
    Returns:
      [B, N, T] in the activation dtype.
    """
    if low_res.shape != high_res.shape:
        raise ValueError(
            f"'low_res' (shape {low_res.shape}) and 'high_res' "
            f"(shape {high_res.shape}) must have the same shape"
        )
    if low_res.dtype != high_res.dtype:
        raise ValueError(
            f"'low_res' (dtype {low_res.dtype}) and 'high_res' "
            f"(dtype {high_res.dtype}) must have the same dtype"
        )
    B, N, T = low_res.shape
    M = B * N
    act_dtype = low_res.dtype

    low2d = low_res.reshape(M, T)
    high2d = high_res.reshape(M, T)
    # Split the Linear weight into the halves acting on low_res / high_res,
    # pre-transpose, and cast to the activation dtype so the MXU sees matched
    # operands (bf16 activations keep the full-rate bf16 path and the resident
    # weights take half the VMEM).  Under jit with constant params this whole
    # block is folded; callers with traced params and small M should cache the
    # split/transposed halves outside the per-call path.
    w1 = weight[:, :T].T.astype(act_dtype)   # (T, T)
    w2 = weight[:, T:].T.astype(act_dtype)   # (T, T)
    # Bias stays f32: it never touches the MXU, is tiny in VMEM, and keeps the
    # final add exact regardless of the activation dtype.
    b = bias.reshape(1, T).astype(jnp.float32)

    act_itemsize = jnp.dtype(act_dtype).itemsize
    w_itemsize = act_itemsize

    cap = _physical_vmem_bytes()
    if cap >= 96 * 1024 * 1024:        # v5e / v6e: 128 MiB per TC
        budget = int(cap * 0.6)
        tm_cap = 1024
    else:                              # v7x: 64 MiB per TC, compute-bound anyway
        budget = int(cap * 0.45)
        tm_cap = 512

    if tm is None:
        tm = _default_row_tile(M, T, act_itemsize, w_itemsize, budget, tm_cap)
    elif tm != M:
        tm = min(_round_up(int(tm), 8), _round_up(M, 8))
    grid_m = pl.cdiv(M, tm)

    # Raise the scoped-VMEM limit just enough for the chosen tiling (matters on
    # v5e's 16 MiB / v7x's 32 MiB scoped defaults), staying below physical.
    weight_bytes = 2 * T * T * w_itemsize + T * 4
    tile_bytes = (2 * 2 + 2) * T * act_itemsize * tm
    vmem_limit = int(min(0.9 * cap,
                         max(weight_bytes + tile_bytes * 1.25 + (4 << 20),
                             32 << 20)))

    resident = pl.Buffered(1)  # constant index_map -> no double buffer needed

    out2d = pl.pallas_call(
        _token_concat_kernel,
        out_shape=jax.ShapeDtypeStruct((M, T), act_dtype),
        grid_spec=pltpu.PrefetchScalarGridSpec(
            num_scalar_prefetch=0,
            grid=(grid_m,),
            in_specs=[
                pl.BlockSpec((tm, T), lambda i: (i, 0)),    # low rows tile
                pl.BlockSpec((tm, T), lambda i: (i, 0)),    # high rows tile
                pl.BlockSpec((T, T), lambda i: (0, 0),      # w1 (resident)
                             pipeline_mode=resident),
                pl.BlockSpec((T, T), lambda i: (0, 0),      # w2 (resident)
                             pipeline_mode=resident),
                pl.BlockSpec((1, T), lambda i: (0, 0),      # bias (resident)
                             pipeline_mode=resident),
            ],
            out_specs=pl.BlockSpec((tm, T), lambda i: (i, 0)),
        ),
        compiler_params=pltpu.CompilerParams(
            # "parallel" shards the row axis across v7x's two TensorCores; the
            # even, >=4-step grid above gives each core >=2 pipelined steps.
            dimension_semantics=("parallel",),
            vmem_limit_bytes=vmem_limit,
        ),
    )(low2d, high2d, w1, w2, b)

    return out2d.reshape(B, N, T)


def init_params(key, token_size, dtype=jnp.float32):
    """Deterministic nn.Linear(token_size*2, token_size)-style init."""
    in_features = token_size * 2
    bound = 1.0 / jnp.sqrt(jnp.asarray(in_features, jnp.float32))
    kw, kb = jax.random.split(key)
    weight = jax.random.uniform(
        kw, (token_size, in_features), dtype=dtype, minval=-bound, maxval=bound
    )
    bias = jax.random.uniform(
        kb, (token_size,), dtype=dtype, minval=-bound, maxval=bound
    )
    return weight, bias


if __name__ == "__main__":
    batch, num_tokens, token_size = 2, 8, 32

    key = jax.random.PRNGKey(0)
    k_low, k_high, k_params = jax.random.split(key, 3)

    low_res = jax.random.normal(k_low, (batch, num_tokens, token_size), jnp.float32)
    high_res = jax.random.normal(k_high, (batch, num_tokens, token_size), jnp.float32)
    weight, bias = init_params(k_params, token_size)

    out = multivit_token_concatenator(low_res, high_res, weight, bias)
    out = jax.block_until_ready(out)

    # Pure-JAX reference: Linear(concat(low, high)).
    ref = jnp.concatenate([low_res, high_res], axis=2) @ weight.T + bias
    assert out.shape == (batch, num_tokens, token_size)
    assert out.dtype == low_res.dtype
    assert jnp.allclose(out, ref, atol=1e-5, rtol=1e-5)

    print("KERNEL_OK")
</pallas_src>

<mosaic_0001>
module attributes {stable_mosaic.version = 11 : i64} {
  func.func @_token_concat_kernel(%arg0: i32, %arg1: memref<8x32xf32, #tpu.memory_space<vmem>>, %arg2: memref<8x32xf32, #tpu.memory_space<vmem>>, %arg3: memref<32x32xf32, #tpu.memory_space<vmem>>, %arg4: memref<32x32xf32, #tpu.memory_space<vmem>>, %arg5: memref<1x32xf32, #tpu.memory_space<vmem>>, %arg6: memref<8x32xf32, #tpu.memory_space<vmem>>) attributes {dimension_semantics = [#tpu.dimension_semantics<parallel>], iteration_bounds = array<i64: 2>, scalar_prefetch = 0 : i64, scratch_operands = 0 : i64, tpu.core_type = #tpu.core_type<tc>, window_params = [{transform_indices = @transform_0, window_bounds = array<i64: 8, 32>}, {transform_indices = @transform_1, window_bounds = array<i64: 8, 32>}, {pipeline_mode = #tpu.pipeline_mode<synchronous>, transform_indices = @transform_2, window_bounds = array<i64: 32, 32>}, {pipeline_mode = #tpu.pipeline_mode<synchronous>, transform_indices = @transform_3, window_bounds = array<i64: 32, 32>}, {pipeline_mode = #tpu.pipeline_mode<synchronous>, transform_indices = @transform_4, window_bounds = array<i64: 1, 32>}, {transform_indices = @transform_5, window_bounds = array<i64: 8, 32>}]} {
    %c0 = arith.constant 0 : index
    %c0_0 = arith.constant 0 : index
    %0 = vector.load %arg1[%c0, %c0_0] : memref<8x32xf32, #tpu.memory_space<vmem>>, vector<8x32xf32>
    %c0_1 = arith.constant 0 : index
    %c0_2 = arith.constant 0 : index
    %1 = vector.load %arg3[%c0_1, %c0_2] : memref<32x32xf32, #tpu.memory_space<vmem>>, vector<32x32xf32>
    %cst = arith.constant dense<0.000000e+00> : vector<8x32xf32>
    %2 = tpu.matmul %0, %1, %cst {dimension_numbers = #tpu.dot_dimension_numbers<[1], [0], [0], [1], [0, 0, 1, 1], [], []>} : vector<8x32xf32>, vector<32x32xf32>, vector<8x32xf32> -> vector<8x32xf32>
    %c0_3 = arith.constant 0 : index
    %c0_4 = arith.constant 0 : index
    %3 = vector.load %arg2[%c0_3, %c0_4] : memref<8x32xf32, #tpu.memory_space<vmem>>, vector<8x32xf32>
    %c0_5 = arith.constant 0 : index
    %c0_6 = arith.constant 0 : index
    %4 = vector.load %arg4[%c0_5, %c0_6] : memref<32x32xf32, #tpu.memory_space<vmem>>, vector<32x32xf32>
    %cst_7 = arith.constant dense<0.000000e+00> : vector<8x32xf32>
    %5 = tpu.matmul %3, %4, %cst_7 {dimension_numbers = #tpu.dot_dimension_numbers<[1], [0], [0], [1], [0, 0, 1, 1], [], []>} : vector<8x32xf32>, vector<32x32xf32>, vector<8x32xf32> -> vector<8x32xf32>
    %6 = arith.addf %2, %5 : vector<8x32xf32>
    %c0_8 = arith.constant 0 : index
    %c0_9 = arith.constant 0 : index
    %7 = vector.load %arg5[%c0_8, %c0_9] : memref<1x32xf32, #tpu.memory_space<vmem>>, vector<1x32xf32>
    %8 = vector.broadcast %7 : vector<1x32xf32> to vector<8x32xf32>
    %9 = arith.addf %6, %8 : vector<8x32xf32>
    %c0_10 = arith.constant 0 : index
    %c0_11 = arith.constant 0 : index
    %10 = vector.load %arg6[%c0_10, %c0_11] : memref<8x32xf32, #tpu.memory_space<vmem>>, vector<8x32xf32>
    tpu.vector_store %arg6[%c0_10, %c0_11], %9 {strides = array<i32>} : memref<8x32xf32, #tpu.memory_space<vmem>>, vector<8x32xf32>,
    return
  }
  func.func @transform_0(%arg0: i32) -> (i32, i32) {
    %c0_i32 = arith.constant 0 : i32
    %c0_i32_0 = arith.constant 0 : i32
    return %arg0, %c0_i32 : i32, i32
  }
  func.func @transform_1(%arg0: i32) -> (i32, i32) {
    %c0_i32 = arith.constant 0 : i32
    %c0_i32_0 = arith.constant 0 : i32
    return %arg0, %c0_i32 : i32, i32
  }
  func.func @transform_2(%arg0: i32) -> (i32, i32) {
    %c0_i32 = arith.constant 0 : i32
    %c0_i32_0 = arith.constant 0 : i32
    %c0_i32_1 = arith.constant 0 : i32
    return %c0_i32, %c0_i32_0 : i32, i32
  }
  func.func @transform_3(%arg0: i32) -> (i32, i32) {
    %c0_i32 = arith.constant 0 : i32
    %c0_i32_0 = arith.constant 0 : i32
    %c0_i32_1 = arith.constant 0 : i32
    return %c0_i32, %c0_i32_0 : i32, i32
  }
  func.func @transform_4(%arg0: i32) -> (i32, i32) {
    %c0_i32 = arith.constant 0 : i32
    %c0_i32_0 = arith.constant 0 : i32
    %c0_i32_1 = arith.constant 0 : i32
    return %c0_i32, %c0_i32_0 : i32, i32
  }
  func.func @transform_5(%arg0: i32) -> (i32, i32) {
    %c0_i32 = arith.constant 0 : i32
    %c0_i32_0 = arith.constant 0 : i32
    return %arg0, %c0_i32 : i32, i32
  }
}

</mosaic_0001>

<llo_original>
// kernel: multivit_token_concatenator.1
$region0: #{multivit_token_concatenator.1}
  #allocation0 [shape = 'u32[]', space=smem, size = 0x4, offset = 0x4, fixed_abs, tag = 'smem constant byte address 0x4 - core index']
  #allocation1 [shape = 'u32[72,128]{1,0:T(1,128)}', space=vmem, size = 0x9000, scoped, tag = 'internal scratch']
  %s0 = inlined_call_operand.vmem [shape: f32[16,32], index: 0, kind: input, shape index: {}]
  %s1 = inlined_call_operand.vmem [shape: f32[16,32], index: 1, kind: input, shape index: {}]
  %s2 = inlined_call_operand.vmem [shape: f32[32,32], index: 2, kind: input, shape index: {}]
  %s3 = inlined_call_operand.vmem [shape: f32[32,32], index: 3, kind: input, shape index: {}]
  %s4 = inlined_call_operand.vmem [shape: f32[1,32], index: 4, kind: input, shape index: {}]
  %s5 = inlined_call_operand.hbm [shape: f32[16,32], index: 5, kind: output, shape index: {}]
  %s6 = sld [smem:[#allocation0]]
  $region53: #{multivit_token_concatenator.1} parent=0
    _
  %s8 = ssub.s32 1, %s6
  %s9 = scalar_select 0, %s8, %s6
  $region1: #{multivit_token_concatenator.1} parent=0
    #allocation2 [shape = 'u8[8192]{0}', space=vmem, size = 0x2000, scoped, tag = 'output window, operand 0']
    #allocation3 [shape = 's32[2]{0}', space=sflag, size = 0x8, scoped, tag = 'scoped memory for multivit_token_concatenator.1']
    %10 = vsyncpa [#allocation3], 0
    %s11 = scalar_lea.sflag [#allocation3], 1
    %12 = vsyncpa %s11, 0
    loop: start=0, step=1, limit=4
    $region2: #{multivit_token_concatenator.1} parent=1 // loop_pre_header
      _
    $region3: #{multivit_token_concatenator.1} parent=1 // loop_header
      %s14 = sphi 0, %s18
      %p15 = scmp.ge.s32.totalorder %s14, 4
      %s24 = sphi 0, %s26
      %s27 = sphi 0, %s24
      %s28 = sphi 0, %s27
      %s44 = sphi 0, %s28
      %s50 = sphi 0, %s52
      %s53 = sphi 0, %s50
      %s54 = sphi 0, %s53
      %s70 = sphi 0, %s54
      %s74 = sphi 0, %s74
      %s76 = sphi 0, %s74
      %s77 = sphi 0, %s76
      %s91 = sphi 0, %s77
      %s95 = sphi 0, %s95
      %s97 = sphi 0, %s95
      %s98 = sphi 0, %s97
      %s112 = sphi 0, %s98
      %s116 = sphi 0, %s116
      %s118 = sphi 0, %s116
      %s119 = sphi 0, %s118
      %s133 = sphi 0, %s119
      %s139 = sphi 0, %s141
      %s142 = sphi 0, %s139
      %s143 = sphi 0, %s142
      %s159 = sphi 0, %s143
    $region4: #{multivit_token_concatenator.1} parent=1 // loop_header_branch
      %17 = sbr.rel (%p15) target = $region8
    $region5: #{multivit_token_concatenator.1} parent=1 // loop_body
      %s19 = ssub.s32 %s14, 1
      %s20 = ssub.s32 %s14, 2
      %s21 = sadd.s32 %s14, 1
      %s22 = ssub.s32 %s14, %s21
      %p23 = scmp.eq.s32.totalorder %s22, 0
      %s25 = sadd.s32 %s24, 1
      %s26 = scalar_select %p23, %s24, %s25
      %p29 = pneg %p23
      %p30 = scmp.eq.s32.totalorder %s14, 1
      %p31 = por %p29, %p30
      %p32 = scmp.ne.s32.totalorder %s24, %s27
      %p33 = scmp.eq.s32.totalorder %s14, 0
      %p34 = por %p32, %p33
      %p35 = scmp.ne.s32.totalorder %s24, %s27
      %p36 = scmp.eq.s32.totalorder %s19, 1
      %p37 = por %p35, %p36
      %p38 = scmp.ne.s32.totalorder %s27, %s28
      %p39 = scmp.eq.s32.totalorder %s19, 0
      %p40 = por %p38, %p39
      %p41 = scmp.ne.s32.totalorder %s27, %s28
      %p42 = scmp.eq.s32.totalorder %s20, 1
      %p43 = por %p41, %p42
      %p45 = scmp.ne.s32.totalorder %s28, %s44
      %p46 = scmp.eq.s32.totalorder %s20, 0
      %p47 = por %p45, %p46
      %s48 = ssub.s32 %s14, %s21
      %p49 = scmp.eq.s32.totalorder %s48, 0
      %s51 = sadd.s32 %s50, 1
      %s52 = scalar_select %p49, %s50, %s51
      %p55 = pneg %p49
      %p56 = scmp.eq.s32.totalorder %s14, 1
      %p57 = por %p55, %p56
      %p58 = scmp.ne.s32.totalorder %s50, %s53
      %p59 = scmp.eq.s32.totalorder %s14, 0
      %p60 = por %p58, %p59
      %p61 = scmp.ne.s32.totalorder %s50, %s53
      %p62 = scmp.eq.s32.totalorder %s19, 1
      %p63 = por %p61, %p62
      %p64 = scmp.ne.s32.totalorder %s53, %s54
      %p65 = scmp.eq.s32.totalorder %s19, 0
      %p66 = por %p64, %p65
      %p67 = scmp.ne.s32.totalorder %s53, %s54
      %p68 = scmp.eq.s32.totalorder %s20, 1
      %p69 = por %p67, %p68
      %p71 = scmp.ne.s32.totalorder %s54, %s70
      %p72 = scmp.eq.s32.totalorder %s20, 0
      %p73 = por %p71, %p72
      %s75 = sadd.s32 %s74, 1
      %p78 = scmp.eq.s32.totalorder %s14, 1
      %p79 = scmp.ne.s32.totalorder %s74, %s76
      %p80 = scmp.eq.s32.totalorder %s14, 0
      %p81 = por %p79, %p80
      %p82 = scmp.ne.s32.totalorder %s74, %s76
      %p83 = scmp.eq.s32.totalorder %s19, 1
      %p84 = por %p82, %p83
      %p85 = scmp.ne.s32.totalorder %s76, %s77
      %p86 = scmp.eq.s32.totalorder %s19, 0
      %p87 = por %p85, %p86
      %p88 = scmp.ne.s32.totalorder %s76, %s77
      %p89 = scmp.eq.s32.totalorder %s20, 1
      %p90 = por %p88, %p89
      %p92 = scmp.ne.s32.totalorder %s77, %s91
      %p93 = scmp.eq.s32.totalorder %s20, 0
      %p94 = por %p92, %p93
      %s96 = sadd.s32 %s95, 1
      %p99 = scmp.eq.s32.totalorder %s14, 1
      %p100 = scmp.ne.s32.totalorder %s95, %s97
      %p101 = scmp.eq.s32.totalorder %s14, 0
      %p102 = por %p100, %p101
      %p103 = scmp.ne.s32.totalorder %s95, %s97
      %p104 = scmp.eq.s32.totalorder %s19, 1
      %p105 = por %p103, %p104
      %p106 = scmp.ne.s32.totalorder %s97, %s98
      %p107 = scmp.eq.s32.totalorder %s19, 0
      %p108 = por %p106, %p107
      %p109 = scmp.ne.s32.totalorder %s97, %s98
      %p110 = scmp.eq.s32.totalorder %s20, 1
      %p111 = por %p109, %p110
      %p113 = scmp.ne.s32.totalorder %s98, %s112
      %p114 = scmp.eq.s32.totalorder %s20, 0
      %p115 = por %p113, %p114
      %s117 = sadd.s32 %s116, 1
      %p120 = scmp.eq.s32.totalorder %s14, 1
      %p121 = scmp.ne.s32.totalorder %s116, %s118
      %p122 = scmp.eq.s32.totalorder %s14, 0
      %p123 = por %p121, %p122
      %p124 = scmp.ne.s32.totalorder %s116, %s118
      %p125 = scmp.eq.s32.totalorder %s19, 1
      %p126 = por %p124, %p125
      %p127 = scmp.ne.s32.totalorder %s118, %s119
      %p128 = scmp.eq.s32.totalorder %s19, 0
      %p129 = por %p127, %p128
      %p130 = scmp.ne.s32.totalorder %s118, %s119
      %p131 = scmp.eq.s32.totalorder %s20, 1
      %p132 = por %p130, %p131
      %p134 = scmp.ne.s32.totalorder %s119, %s133
      %p135 = scmp.eq.s32.totalorder %s20, 0
      %p136 = por %p134, %p135
      %s137 = ssub.s32 %s14, %s21
      %p138 = scmp.eq.s32.totalorder %s137, 0
      %s140 = sadd.s32 %s139, 1
      %s141 = scalar_select %p138, %s139, %s140
      %p144 = pneg %p138
      %p145 = scmp.eq.s32.totalorder %s14, 1
      %p146 = por %p144, %p145
      %p147 = scmp.ne.s32.totalorder %s139, %s142
      %p148 = scmp.eq.s32.totalorder %s14, 0
      %p149 = por %p147, %p148
      %p150 = scmp.ne.s32.totalorder %s139, %s142
      %p151 = scmp.eq.s32.totalorder %s19, 1
      %p152 = por %p150, %p151
      %p153 = scmp.ne.s32.totalorder %s142, %s143
      %p154 = scmp.eq.s32.totalorder %s19, 0
      %p155 = por %p153, %p154
      %p156 = scmp.ne.s32.totalorder %s142, %s143
      %p157 = scmp.eq.s32.totalorder %s20, 1
      %p158 = por %p156, %p157
      %p160 = scmp.ne.s32.totalorder %s143, %s159
      %p161 = scmp.eq.s32.totalorder %s20, 0
      %p162 = por %p160, %p161
      %p163 = scmp.le.s32.totalorder 1, %s14
      %p164 = scmp.lt.s32.totalorder %s14, 3
      %p165 = pnand %p163, %p164
      %p166 = pneg %p165
      // Predicated region
      $region9: #{multivit_token_concatenator.1} parent=5 // pred_check
        _
      $region10: #{multivit_token_concatenator.1} parent=5 // pred_check_branch
        %168 = sbr.rel (%p165) target = $region12
      $region11: #{multivit_token_concatenator.1} parent=5 // pred_region
        %s169 = ssub.s32 %s14, 1
        // Predicated region
        $region13: #{multivit_token_concatenator.1} parent=11 // pred_check
          %p170 = pneg %p87
        $region14: #{multivit_token_concatenator.1} parent=11 // pred_check_branch
          %172 = sbr.rel (%p170) target = $region16
        $region15: #{multivit_token_concatenator.1} parent=11 // pred_region
          _
        $region16: #{multivit_token_concatenator.1} parent=11 // pred_fallthru
          _
        // Predicated region
        $region17: #{multivit_token_concatenator.1} parent=11 // pred_check
          %p173 = pneg %p108
        $region18: #{multivit_token_concatenator.1} parent=11 // pred_check_branch
          %175 = sbr.rel (%p173) target = $region20
        $region19: #{multivit_token_concatenator.1} parent=11 // pred_region
          _
        $region20: #{multivit_token_concatenator.1} parent=11 // pred_fallthru
          _
        // Predicated region
        $region21: #{multivit_token_concatenator.1} parent=11 // pred_check
          %p176 = pneg %p129
        $region22: #{multivit_token_concatenator.1} parent=11 // pred_check_branch
          %178 = sbr.rel (%p176) target = $region24
        $region23: #{multivit_token_concatenator.1} parent=11 // pred_region
          _
        $region24: #{multivit_token_concatenator.1} parent=11 // pred_fallthru
          _
      $region12: #{multivit_token_concatenator.1} parent=5 // pred_fallthru
        _
      %p179 = scmp.lt.s32.totalorder %s14, 2
      // Predicated region
      $region25: #{multivit_token_concatenator.1} parent=5 // pred_check
        %p180 = pneg %p179
      $region26: #{multivit_token_concatenator.1} parent=5 // pred_check_branch
        %182 = sbr.rel (%p180) target = $region28
      $region27: #{multivit_token_concatenator.1} parent=5 // pred_region
        // Predicated region
        $region29: #{multivit_token_concatenator.1} parent=27 // pred_check
          %p183 = pneg %p34
        $region30: #{multivit_token_concatenator.1} parent=27 // pred_check_branch
          %185 = sbr.rel (%p183) target = $region32
        $region31: #{multivit_token_concatenator.1} parent=27 // pred_region
          %p186 = scmp.lt.s32.totalorder %s14, 1
          %s187 = scalar_select %p186, %s14, 1
          %s188 = smul.addr %s187, 8
          %s189 = scalar_lea.vmem %s0, %s188
        $region32: #{multivit_token_concatenator.1} parent=27 // pred_fallthru
          _
        // Predicated region
        $region33: #{multivit_token_concatenator.1} parent=27 // pred_check
          %p190 = pneg %p60
        $region34: #{multivit_token_concatenator.1} parent=27 // pred_check_branch
          %192 = sbr.rel (%p190) target = $region36
        $region35: #{multivit_token_concatenator.1} parent=27 // pred_region
          %p193 = scmp.lt.s32.totalorder %s14, 1
          %s194 = scalar_select %p193, %s14, 1
          %s195 = smul.addr %s194, 8
          %s196 = scalar_lea.vmem %s1, %s195
        $region36: #{multivit_token_concatenator.1} parent=27 // pred_fallthru
          _
      $region28: #{multivit_token_concatenator.1} parent=5 // pred_fallthru
        _
      %p197 = scmp.le.s32.totalorder 1, %s14
      %p198 = scmp.lt.s32.totalorder %s14, 3
      %p199 = pnand %p197, %p198
      %p200 = pneg %p199
      // Predicated region
      $region37: #{multivit_token_concatenator.1} parent=5 // pred_check
        _
      $region38: #{multivit_token_concatenator.1} parent=5 // pred_check_branch
        %202 = sbr.rel (%p199) target = $region40
      $region39: #{multivit_token_concatenator.1} parent=5 // pred_region
        %s203 = ssub.s32 %s14, 1
        %p204 = scmp.lt.s32.totalorder %s19, 1
        %s205 = scalar_select %p204, %s19, 1
        %s206 = smul.addr %s205, 8
        %s207 = scalar_lea.vmem %s0, %s206
        %p208 = pneg %p40
        %p209 = pneg %p37
        %p210 = scmp.lt.s32.totalorder %s19, 1
        %s211 = scalar_select %p210, %s19, 1
        %s212 = smul.addr %s211, 8
        %s213 = scalar_lea.vmem %s1, %s212
        %p214 = pneg %p66
        %p215 = pneg %p63
        %p216 = pneg %p87
        %p217 = pneg %p84
        %p218 = pneg %p108
        %p219 = pneg %p105
        %p220 = pneg %p129
        %p221 = pneg %p126
        %p222 = pneg %p155
        %p223 = pneg %p152
        %s224 = sand.u32 %s142, 1
        %s225 = scalar_lea.sflag [#allocation3], %s224
        %s226 = sand.u32 %s142, 1
        %s227 = smul.addr %s226, 8
        %s228 = scalar_lea.vmem [#allocation2], %s227
        %p229 = scmp.lt.s32.totalorder %s19, 1
        %s230 = scalar_select %p229, %s19, 1
        %s231 = smul.addr %s230, 8
        %s232 = scalar_lea.vmem %s0, %s231
        %p233 = scmp.lt.s32.totalorder %s19, 1
        %s234 = scalar_select %p233, %s19, 1
        %s235 = smul.addr %s234, 8
        %s236 = scalar_lea.vmem %s1, %s235
        %v237 = vld [vmem:[%s232] sm:$0xff]
        %v238 = vld [vmem:[%s2] sm:$0xff]
        %v239 = vld [vmem:[%s2 + $0x8] sm:$0xff]
        %v240 = vld [vmem:[%s2 + $0x10] sm:$0xff]
        %v241 = vld [vmem:[%s2 + $0x18] sm:$0xff]
        %v242 = vld [vmem:[%s236] sm:$0xff]
        %v243 = vld [vmem:[%s3] sm:$0xff]
        %v244 = vld [vmem:[%s3 + $0x8] sm:$0xff]
        %v245 = vld [vmem:[%s3 + $0x10] sm:$0xff]
        %v246 = vld [vmem:[%s3 + $0x18] sm:$0xff]
        %vm247 = vcmask 261120
        %v249 = vsel %vm247, %v242, 0
        %251 = vmatpush.msra.mxu0 0.0
        %252 = vmatpush.msra.mxu0 0.0
        %253 = vmatpush.msra.mxu0 0.0
        %254 = vmatpush.msra.mxu0 0.0
        %255 = vmatpush.msra.mxu0 0.0
        %256 = vmatpush.msra.mxu0 0.0
        %257 = vmatpush.msra.mxu0 0.0
        %258 = vmatpush.msra.mxu0 0.0
        %259 = vmatpush.msra.mxu0 0.0
        %260 = vmatpush.msra.mxu0 0.0
        %261 = vmatpush.msra.mxu0 0.0
        %262 = vmatpush.msra.mxu0 0.0
        %263 = vmatpush.msra.mxu0 %v246
        %264 = vmatpush.msra.mxu0 %v245
        %265 = vmatpush.msra.mxu0 %v244
        %266 = vmatpush.msra.mxu0 %v243
        %267 = vmatmul.f32.gmra.mxu0 %v249
        %v268 = vpop.f32.mrf.mxu0
        %v269 = vadd.f32 0.0, %v268
        %270 = vdwg.mxu0
        %v272 = vsel %vm247, %v237, 0
        %274 = vmatpush.msra.mxu0 0.0
        %275 = vmatpush.msra.mxu0 0.0
        %276 = vmatpush.msra.mxu0 0.0
        %277 = vmatpush.msra.mxu0 0.0
        %278 = vmatpush.msra.mxu0 0.0
        %279 = vmatpush.msra.mxu0 0.0
        %280 = vmatpush.msra.mxu0 0.0
        %281 = vmatpush.msra.mxu0 0.0
        %282 = vmatpush.msra.mxu0 0.0
        %283 = vmatpush.msra.mxu0 0.0
        %284 = vmatpush.msra.mxu0 0.0
        %285 = vmatpush.msra.mxu0 0.0
        %286 = vmatpush.msra.mxu0 %v241
        %287 = vmatpush.msra.mxu0 %v240
        %288 = vmatpush.msra.mxu0 %v239
        %289 = vmatpush.msra.mxu0 %v238
        %290 = vmatmul.f32.gmra.mxu0 %v272
        %v291 = vpop.f32.mrf.mxu0
        %v292 = vadd.f32 %v269, %v291
        %293 = vdwg.mxu0
        %v294 = vld [vmem:[%s4] sm:$0x1]
        %v296 = vperm.slane %v294, 0
        %v298 = vadd.f32 %v292, %v296
        %299 = vst.msk [vmem:[%s228] sm:$0xff] %vm247, %v298
        %s300 = sand.u32 %s142, 1
        %s301 = scalar_lea.sflag [#allocation3], %s300
        %s302 = sand.u32 %s142, 1
        %s303 = smul.addr %s302, 8
        %s304 = scalar_lea.vmem [#allocation2], %s303
        // Predicated region
        $region41: #{multivit_token_concatenator.1} parent=39 // pred_check
          %p305 = pneg %p152
        $region42: #{multivit_token_concatenator.1} parent=39 // pred_check_branch
          %307 = sbr.rel (%p305) target = $region44
        $region43: #{multivit_token_concatenator.1} parent=39 // pred_region
          %309 = vsyncadd %s301, 0
          %s310 = smul.addr %s19, 8
          %s311 = scalar_lea.hbm %s5, %s310
          %s313 = sshll.u32 %s304, 4
          %s314 = int_to_ptr.vmem [resolvable:$true] %s313
          %s315 = sshll.u32 %s311, 4
          %s316 = int_to_ptr.hbm [resolvable:$true] %s315
          %318 = dma.vmem_to_hbm [thread:$0]  %s314, 128, %s316, %s301
        $region44: #{multivit_token_concatenator.1} parent=39 // pred_fallthru
          _
      $region40: #{multivit_token_concatenator.1} parent=5 // pred_fallthru
        _
      %p319 = scmp.le.s32.totalorder 2, %s14
      // Predicated region
      $region45: #{multivit_token_concatenator.1} parent=5 // pred_check
        %p320 = pneg %p319
      $region46: #{multivit_token_concatenator.1} parent=5 // pred_check_branch
        %322 = sbr.rel (%p320) target = $region48
      $region47: #{multivit_token_concatenator.1} parent=5 // pred_region
        %s323 = ssub.s32 %s14, 2
        // Predicated region
        $region49: #{multivit_token_concatenator.1} parent=47 // pred_check
          %p324 = pneg %p158
        $region50: #{multivit_token_concatenator.1} parent=47 // pred_check_branch
          %326 = sbr.rel (%p324) target = $region52
        $region51: #{multivit_token_concatenator.1} parent=47 // pred_region
          %s327 = sand.u32 %s143, 1
          %s328 = scalar_lea.sflag [#allocation3], %s327
          %s329 = sand.u32 %s143, 1
          %s330 = smul.addr %s329, 8
          %s331 = scalar_lea.vmem [#allocation2], %s330
          %333 = dma.done %s328, 128
        $region52: #{multivit_token_concatenator.1} parent=47 // pred_fallthru
          _
      $region48: #{multivit_token_concatenator.1} parent=5 // pred_fallthru
        _
    $region6: #{multivit_token_concatenator.1} parent=1 // loop_footer
      %s18 = sadd.s32 1, %s14
    $region7: #{multivit_token_concatenator.1} parent=1 // loop_footer_branch
      %13 = sbr.rel target = $region3
    $region8: #{multivit_token_concatenator.1} parent=1 // loop_exit
      _
    %334 = vsyncpa [#allocation3], 1
    %s335 = scalar_lea.sflag [#allocation3], 1
    %336 = vsyncpa %s335, 1

</llo_original>
